<compile_context>
chip_gen: v5e
topology: v5e:2x2
jax: 0.10.0
libtpu: 0.0.40
codegen_flags: <defaults>
</compile_context>

<pallas_src>
import numpy as np
import jax
import jax.numpy as jnp
from jax.experimental import pallas as pl
from jax.experimental.pallas import tpu as pltpu

INPUT_DIM = 64
HIDDEN_DIM = 128
OUTPUT_DIM = 1
NHEAD = 4                      # hidden_dim % nhead == 0, no adjustment needed
NUM_LAYERS = 2
FF_DIM = HIDDEN_DIM * 2
LN_EPS = 1e-5


def _round_up(a, m):
    return -(-a // m) * m


# ------------------------- raw (PyTorch-equivalent) parameters -------------------------
def init_raw_params(key, input_dim=INPUT_DIM, hidden_dim=HIDDEN_DIM,
                    output_dim=OUTPUT_DIM, ff_dim=FF_DIM, num_layers=NUM_LAYERS):
    """PyTorch-style uniform(-1/sqrt(fan_in)) Linear init; weights stored as (in, out)
    so y = x @ W + b.  Q/K projections are intentionally not instantiated: with
    seq_len == 1 the attention weight is softmax over a single score == 1, so Q/K
    cannot affect the output (attn_out == out_proj(V_proj(h)))."""
    n_keys = 2 + 4 * num_layers
    ks = jax.random.split(key, n_keys)
    kidx = iter(range(n_keys))

    def lin(k, fan_in, fan_out):
        kw, kb = jax.random.split(k)
        bound = 1.0 / np.sqrt(fan_in)
        w = jax.random.uniform(kw, (fan_in, fan_out), jnp.float32, -bound, bound)
        b = jax.random.uniform(kb, (fan_out,), jnp.float32, -bound, bound)
        return w, b

    wi, bi = lin(ks[next(kidx)], input_dim, hidden_dim)          # input_proj

    layers = []
    for _ in range(num_layers):
        wv, bv = lin(ks[next(kidx)], hidden_dim, hidden_dim)     # V projection
        wo, bo = lin(ks[next(kidx)], hidden_dim, hidden_dim)     # attention out_proj
        w1, b1 = lin(ks[next(kidx)], hidden_dim, ff_dim)         # FFN linear1
        w2, b2 = lin(ks[next(kidx)], ff_dim, hidden_dim)         # FFN linear2
        # LayerNorm gamma/beta are the untrained defaults (1, 0) -> identity affine.
        layers.append(dict(wv=wv, bv=bv, wo=wo, bo=bo, w1=w1, b1=b1, w2=w2, b2=b2))

    w_out, b_out = lin(ks[next(kidx)], hidden_dim, output_dim)   # output head

    return dict(wi=wi, bi=bi, layers=layers, w_out=w_out, b_out=b_out)


# ------------------------- host-side folding into kernel params -------------------------
def fold_params(raw, input_dim=INPUT_DIM, hidden_dim=HIDDEN_DIM, output_dim=OUTPUT_DIM):
    layers = raw["layers"]
    assert len(layers) >= 2, "folding below assumes num_layers >= 2"
    f32, bf16 = jnp.float32, jnp.bfloat16
    eye = jnp.eye(hidden_dim, dtype=f32)

    # Exact for seq_len == 1:  h + attn(h) == h @ (I + Wv@Wo) + (bv@Wo + bo)
    wvo_all = [eye + l["wv"] @ l["wo"] for l in layers]
    bvo_all = [(l["bv"] @ l["wo"] + l["bo"]).reshape(1, hidden_dim) for l in layers]

    # Compose layer-0's folded attention directly into input_proj (exact algebra).
    wi_fold = raw["wi"] @ wvo_all[0]                                   # (input_dim, H)
    bi_fold = raw["bi"].reshape(1, hidden_dim) @ wvo_all[0] + bvo_all[0]

    # Zero-pad input features to a full 128-lane contraction.
    in_pad = _round_up(input_dim, 128)
    wi_pad = jnp.zeros((in_pad, hidden_dim), f32).at[:input_dim].set(wi_fold)

    wvo = jnp.stack(wvo_all[1:])                                       # (L-1, H, H)
    bvo = jnp.stack(bvo_all[1:])                                       # (L-1, 1, H)
    w1 = jnp.stack([l["w1"] for l in layers])                          # (L, H, F)
    b1 = jnp.stack([l["b1"].reshape(1, -1) for l in layers])           # (L, 1, F)
    w2 = jnp.stack([l["w2"] for l in layers])                          # (L, F, H)
    b2 = jnp.stack([l["b2"].reshape(1, -1) for l in layers])           # (L, 1, H)

    # Pad the output head to a lane-dense width -> unmasked stores; wrapper slices back.
    out_pad = _round_up(output_dim, 128)
    wo_pad = jnp.zeros((hidden_dim, out_pad), f32).at[:, :output_dim].set(raw["w_out"])
    bo_pad = jnp.zeros((1, out_pad), f32).at[:, :output_dim].set(
        raw["b_out"].reshape(1, output_dim))

    # Weights -> bf16 (MXU-native, half the HBM traffic); biases stay f32 (added in f32).
    return dict(
        wi=wi_pad.astype(bf16), bi=bi_fold,
        wvo=wvo.astype(bf16), bvo=bvo,
        w1=w1.astype(bf16), b1=b1,
        w2=w2.astype(bf16), b2=b2,
        wo=wo_pad.astype(bf16), bo=bo_pad,
        in_pad=in_pad, out_pad=out_pad,
    )


# ------------------------------- the fused Pallas kernel -------------------------------
def _make_kernel(num_layers):
    f32, bf16 = jnp.float32, jnp.bfloat16

    def layernorm(v):
        # gamma/beta are the untrained defaults (1, 0) -> no affine.
        mu = jnp.mean(v, axis=-1, keepdims=True)
        var = jnp.mean(v * v, axis=-1, keepdims=True) - mu * mu       # E[x^2] - mu^2
        return (v - mu) * jax.lax.rsqrt(var + LN_EPS)                 # rsqrt -> EUP slot

    def kernel(x_ref, wi_ref, bi_ref, wvo_ref, bvo_ref,
               w1_ref, b1_ref, w2_ref, b2_ref, wo_ref, bo_ref, out_ref):
        # input_proj already composed with layer-0's (I + Wv@Wo) on the host.
        pre = jnp.dot(x_ref[...].astype(bf16), wi_ref[...],
                      preferred_element_type=f32) + bi_ref[...]

        h = None
        for l in range(num_layers):                 # static unroll (num_layers == 2)
            if l > 0:
                # attention + residual for layers >= 1 (wvo == I + Wv@Wo, host-folded)
                pre = jnp.dot(h.astype(bf16), wvo_ref[l - 1],
                              preferred_element_type=f32) + bvo_ref[l - 1]
            h = layernorm(pre)                      # LayerNorm1
            ff = jnp.maximum(
                jnp.dot(h.astype(bf16), w1_ref[l], preferred_element_type=f32)
                + b1_ref[l], 0.0)
            ff = jnp.dot(ff.astype(bf16), w2_ref[l], preferred_element_type=f32) + b2_ref[l]
            h = layernorm(h + ff)                   # LayerNorm2

        # output head (lane-dense, padded to 128)
        out_ref[...] = jnp.dot(h.astype(bf16), wo_ref[...],
                               preferred_element_type=f32) + bo_ref[...]

    return kernel


# ------------------------------- wrapper -------------------------------
def transformer_baseline(x, params, output_dim=OUTPUT_DIM):
    assert x.ndim == 2, "only the 2-D input path (seq_len == 1) is implemented"
    b, d = x.shape
    in_pad = params["in_pad"]
    out_pad = params["out_pad"]

    # Batch blocking: cap 512 (tile sweeps show >=512 rows ~ roofline), multiple of 8.
    # For B > 16 pick the block so the grid has >= 2 blocks, letting
    # dimension_semantics=("parallel",) shard batch blocks across v7x's 2 TensorCores.
    if b <= 16:
        bb = _round_up(b, 8)
    else:
        bb = min(512, _round_up(-(-b // 2), 8))
    b_pad = _round_up(b, bb)
    grid = (b_pad // bb,)

    # Zero-pad batch (to a block multiple) and features (to 128 lanes).  x stays f32 in
    # HBM/VMEM (keeps (8,128) f32 tiling for any bb); cast to bf16 at the dot in-kernel.
    xp = jnp.zeros((b_pad, in_pad), jnp.float32).at[:b, :d].set(x)

    inputs = [
        xp, params["wi"], params["bi"],
        params["wvo"], params["bvo"],
        params["w1"], params["b1"], params["w2"], params["b2"],
        params["wo"], params["bo"],
    ]

    def const_spec(a):
        nd = a.ndim
        return pl.BlockSpec(a.shape, lambda i, _nd=nd: (0,) * _nd)   # VMEM-resident weights

    in_specs = [pl.BlockSpec((bb, in_pad), lambda i: (i, 0))] + \
               [const_spec(a) for a in inputs[1:]]

    out = pl.pallas_call(
        _make_kernel(NUM_LAYERS),
        out_shape=jax.ShapeDtypeStruct((b_pad, out_pad), jnp.float32),
        grid_spec=pltpu.PrefetchScalarGridSpec(
            num_scalar_prefetch=0,
            grid=grid,
            in_specs=in_specs,
            out_specs=pl.BlockSpec((bb, out_pad), lambda i: (i, 0)),
        ),
        compiler_params=pltpu.CompilerParams(
            dimension_semantics=("parallel",),      # shard batch blocks over TCs (v7x)
            vmem_limit_bytes=32 * 1024 * 1024,      # working set << 32 MiB even at bb=512
        ),
    )(*inputs)

    return out[:b, :output_dim]


# ------------------------------- pure-JAX reference (f32, unfolded) -------------------------------
def reference_forward(x, raw):
    def ln(v):
        mu = jnp.mean(v, axis=-1, keepdims=True)
        var = jnp.mean((v - mu) ** 2, axis=-1, keepdims=True)
        return (v - mu) * jax.lax.rsqrt(var + LN_EPS)

    h = x @ raw["wi"] + raw["bi"]
    for lyr in raw["layers"]:
        sa = (h @ lyr["wv"] + lyr["bv"]) @ lyr["wo"] + lyr["bo"]   # seq_len==1 attention
        h = ln(h + sa)
        ff = jnp.maximum(h @ lyr["w1"] + lyr["b1"], 0.0) @ lyr["w2"] + lyr["b2"]
        h = ln(h + ff)
    return h @ raw["w_out"] + raw["b_out"]


# ------------------------------- main -------------------------------
if __name__ == "__main__":
    key = jax.random.PRNGKey(0)
    kx, kp = jax.random.split(key)

    B = 8
    x = jax.random.normal(kx, (B, INPUT_DIM), jnp.float32)

    raw = init_raw_params(kp)
    params = fold_params(raw)

    out = transformer_baseline(x, params, OUTPUT_DIM)
    out = jax.block_until_ready(out)

    assert out.shape == (B, OUTPUT_DIM), out.shape
    assert bool(jnp.all(jnp.isfinite(out)))

    # Validate the host-folding algebra + bf16 weights against the f32 reference.
    ref = reference_forward(x, raw)
    max_err = float(jnp.max(jnp.abs(out - ref)))
    assert max_err < 1e-1, f"max abs err vs f32 reference: {max_err}"

    print("KERNEL_OK")
</pallas_src>

<mosaic_0001>
module attributes {stable_mosaic.version = 11 : i64} {
  func.func @kernel(%arg0: i32, %arg1: memref<8x128xf32, #tpu.memory_space<vmem>>, %arg2: memref<128x128xbf16, #tpu.memory_space<vmem>>, %arg3: memref<1x128xf32, #tpu.memory_space<vmem>>, %arg4: memref<1x128x128xbf16, #tpu.memory_space<vmem>>, %arg5: memref<1x1x128xf32, #tpu.memory_space<vmem>>, %arg6: memref<2x128x256xbf16, #tpu.memory_space<vmem>>, %arg7: memref<2x1x256xf32, #tpu.memory_space<vmem>>, %arg8: memref<2x256x128xbf16, #tpu.memory_space<vmem>>, %arg9: memref<2x1x128xf32, #tpu.memory_space<vmem>>, %arg10: memref<128x128xbf16, #tpu.memory_space<vmem>>, %arg11: memref<1x128xf32, #tpu.memory_space<vmem>>, %arg12: memref<8x128xf32, #tpu.memory_space<vmem>>) attributes {dimension_semantics = [#tpu.dimension_semantics<parallel>], iteration_bounds = array<i64: 1>, scalar_prefetch = 0 : i64, scratch_operands = 0 : i64, tpu.core_type = #tpu.core_type<tc>, window_params = [{transform_indices = @transform_0, window_bounds = array<i64: 8, 128>}, {pipeline_mode = #tpu.pipeline_mode<synchronous>, transform_indices = @transform_1, window_bounds = array<i64: 128, 128>}, {pipeline_mode = #tpu.pipeline_mode<synchronous>, transform_indices = @transform_2, window_bounds = array<i64: 1, 128>}, {pipeline_mode = #tpu.pipeline_mode<synchronous>, transform_indices = @transform_3, window_bounds = array<i64: 1, 128, 128>}, {pipeline_mode = #tpu.pipeline_mode<synchronous>, transform_indices = @transform_4, window_bounds = array<i64: 1, 1, 128>}, {pipeline_mode = #tpu.pipeline_mode<synchronous>, transform_indices = @transform_5, window_bounds = array<i64: 2, 128, 256>}, {pipeline_mode = #tpu.pipeline_mode<synchronous>, transform_indices = @transform_6, window_bounds = array<i64: 2, 1, 256>}, {pipeline_mode = #tpu.pipeline_mode<synchronous>, transform_indices = @transform_7, window_bounds = array<i64: 2, 256, 128>}, {pipeline_mode = #tpu.pipeline_mode<synchronous>, transform_indices = @transform_8, window_bounds = array<i64: 2, 1, 128>}, {pipeline_mode = #tpu.pipeline_mode<synchronous>, transform_indices = @transform_9, window_bounds = array<i64: 128, 128>}, {pipeline_mode = #tpu.pipeline_mode<synchronous>, transform_indices = @transform_10, window_bounds = array<i64: 1, 128>}, {transform_indices = @transform_11, window_bounds = array<i64: 8, 128>}]} {
    %c0 = arith.constant 0 : index
    %c0_0 = arith.constant 0 : index
    %0 = vector.load %arg1[%c0, %c0_0] : memref<8x128xf32, #tpu.memory_space<vmem>>, vector<8x128xf32>
    %1 = arith.truncf %0 : vector<8x128xf32> to vector<8x128xbf16>
    %c0_1 = arith.constant 0 : index
    %c0_2 = arith.constant 0 : index
    %2 = vector.load %arg2[%c0_1, %c0_2] : memref<128x128xbf16, #tpu.memory_space<vmem>>, vector<128x128xbf16>
    %cst = arith.constant dense<0.000000e+00> : vector<8x128xf32>
    %3 = tpu.matmul %1, %2, %cst {dimension_numbers = #tpu.dot_dimension_numbers<[1], [0], [0], [1], [0, 0, 1, 1], [], []>} : vector<8x128xbf16>, vector<128x128xbf16>, vector<8x128xf32> -> vector<8x128xf32>
    %c0_3 = arith.constant 0 : index
    %c0_4 = arith.constant 0 : index
    %4 = vector.load %arg3[%c0_3, %c0_4] : memref<1x128xf32, #tpu.memory_space<vmem>>, vector<1x128xf32>
    %5 = vector.broadcast %4 : vector<1x128xf32> to vector<8x128xf32>
    %6 = arith.addf %3, %5 : vector<8x128xf32>
    %cst_5 = arith.constant dense<0.000000e+00> : vector<8xf32>
    %7 = vector.multi_reduction <add>, %6, %cst_5 [1] : vector<8x128xf32> to vector<8xf32>
    %8 = vector.shape_cast %7 : vector<8xf32> to vector<8x1xf32>
    %cst_6 = arith.constant 1.280000e+02 : f32
    %9 = vector.broadcast %cst_6 : f32 to vector<8x1xf32>
    %10 = arith.divf %8, %9 : vector<8x1xf32>
    %11 = arith.mulf %6, %6 : vector<8x128xf32>
    %cst_7 = arith.constant dense<0.000000e+00> : vector<8xf32>
    %12 = vector.multi_reduction <add>, %11, %cst_7 [1] : vector<8x128xf32> to vector<8xf32>
    %13 = vector.shape_cast %12 : vector<8xf32> to vector<8x1xf32>
    %cst_8 = arith.constant 1.280000e+02 : f32
    %14 = vector.broadcast %cst_8 : f32 to vector<8x1xf32>
    %15 = arith.divf %13, %14 : vector<8x1xf32>
    %16 = arith.mulf %10, %10 : vector<8x1xf32>
    %17 = arith.subf %15, %16 : vector<8x1xf32>
    %18 = vector.broadcast %10 : vector<8x1xf32> to vector<8x128xf32>
    %19 = arith.subf %6, %18 : vector<8x128xf32>
    %cst_9 = arith.constant 9.99999974E-6 : f32
    %20 = vector.broadcast %cst_9 : f32 to vector<8x1xf32>
    %21 = arith.addf %17, %20 : vector<8x1xf32>
    %22 = math.rsqrt %21 : vector<8x1xf32>
    %23 = vector.broadcast %22 : vector<8x1xf32> to vector<8x128xf32>
    %24 = arith.mulf %19, %23 : vector<8x128xf32>
    %25 = arith.truncf %24 : vector<8x128xf32> to vector<8x128xbf16>
    %c0_10 = arith.constant 0 : index
    %c0_11 = arith.constant 0 : index
    %c0_12 = arith.constant 0 : index
    %26 = vector.load %arg6[%c0_10, %c0_11, %c0_12] : memref<2x128x256xbf16, #tpu.memory_space<vmem>>, vector<1x128x256xbf16>
    %27 = vector.shape_cast %26 : vector<1x128x256xbf16> to vector<128x256xbf16>
    %cst_13 = arith.constant dense<0.000000e+00> : vector<8x256xf32>
    %28 = tpu.matmul %25, %27, %cst_13 {dimension_numbers = #tpu.dot_dimension_numbers<[1], [0], [0], [1], [0, 0, 1, 1], [], []>} : vector<8x128xbf16>, vector<128x256xbf16>, vector<8x256xf32> -> vector<8x256xf32>
    %c0_14 = arith.constant 0 : index
    %c0_15 = arith.constant 0 : index
    %c0_16 = arith.constant 0 : index
    %29 = vector.load %arg7[%c0_14, %c0_15, %c0_16] : memref<2x1x256xf32, #tpu.memory_space<vmem>>, vector<1x1x256xf32>
    %30 = vector.shape_cast %29 : vector<1x1x256xf32> to vector<1x256xf32>
    %31 = vector.broadcast %30 : vector<1x256xf32> to vector<8x256xf32>
    %32 = arith.addf %28, %31 : vector<8x256xf32>
    %cst_17 = arith.constant 0.000000e+00 : f32
    %33 = vector.broadcast %cst_17 : f32 to vector<8x256xf32>
    %34 = arith.maximumf %32, %33 : vector<8x256xf32>
    %35 = arith.truncf %34 : vector<8x256xf32> to vector<8x256xbf16>
    %c0_18 = arith.constant 0 : index
    %c0_19 = arith.constant 0 : index
    %c0_20 = arith.constant 0 : index
    %36 = vector.load %arg8[%c0_18, %c0_19, %c0_20] : memref<2x256x128xbf16, #tpu.memory_space<vmem>>, vector<1x256x128xbf16>
    %37 = vector.shape_cast %36 : vector<1x256x128xbf16> to vector<256x128xbf16>
    %cst_21 = arith.constant dense<0.000000e+00> : vector<8x128xf32>
    %38 = tpu.matmul %35, %37, %cst_21 {dimension_numbers = #tpu.dot_dimension_numbers<[1], [0], [0], [1], [0, 0, 1, 1], [], []>} : vector<8x256xbf16>, vector<256x128xbf16>, vector<8x128xf32> -> vector<8x128xf32>
    %c0_22 = arith.constant 0 : index
    %c0_23 = arith.constant 0 : index
    %c0_24 = arith.constant 0 : index
    %39 = vector.load %arg9[%c0_22, %c0_23, %c0_24] : memref<2x1x128xf32, #tpu.memory_space<vmem>>, vector<1x1x128xf32>
    %40 = vector.shape_cast %39 : vector<1x1x128xf32> to vector<1x128xf32>
    %41 = vector.broadcast %40 : vector<1x128xf32> to vector<8x128xf32>
    %42 = arith.addf %38, %41 : vector<8x128xf32>
    %43 = arith.addf %24, %42 : vector<8x128xf32>
    %cst_25 = arith.constant dense<0.000000e+00> : vector<8xf32>
    %44 = vector.multi_reduction <add>, %43, %cst_25 [1] : vector<8x128xf32> to vector<8xf32>
    %45 = vector.shape_cast %44 : vector<8xf32> to vector<8x1xf32>
    %cst_26 = arith.constant 1.280000e+02 : f32
    %46 = vector.broadcast %cst_26 : f32 to vector<8x1xf32>
    %47 = arith.divf %45, %46 : vector<8x1xf32>
    %48 = arith.mulf %43, %43 : vector<8x128xf32>
    %cst_27 = arith.constant dense<0.000000e+00> : vector<8xf32>
    %49 = vector.multi_reduction <add>, %48, %cst_27 [1] : vector<8x128xf32> to vector<8xf32>
    %50 = vector.shape_cast %49 : vector<8xf32> to vector<8x1xf32>
    %cst_28 = arith.constant 1.280000e+02 : f32
    %51 = vector.broadcast %cst_28 : f32 to vector<8x1xf32>
    %52 = arith.divf %50, %51 : vector<8x1xf32>
    %53 = arith.mulf %47, %47 : vector<8x1xf32>
    %54 = arith.subf %52, %53 : vector<8x1xf32>
    %55 = vector.broadcast %47 : vector<8x1xf32> to vector<8x128xf32>
    %56 = arith.subf %43, %55 : vector<8x128xf32>
    %cst_29 = arith.constant 9.99999974E-6 : f32
    %57 = vector.broadcast %cst_29 : f32 to vector<8x1xf32>
    %58 = arith.addf %54, %57 : vector<8x1xf32>
    %59 = math.rsqrt %58 : vector<8x1xf32>
    %60 = vector.broadcast %59 : vector<8x1xf32> to vector<8x128xf32>
    %61 = arith.mulf %56, %60 : vector<8x128xf32>
    %62 = arith.truncf %61 : vector<8x128xf32> to vector<8x128xbf16>
    %c0_30 = arith.constant 0 : index
    %c0_31 = arith.constant 0 : index
    %c0_32 = arith.constant 0 : index
    %63 = vector.load %arg4[%c0_30, %c0_31, %c0_32] : memref<1x128x128xbf16, #tpu.memory_space<vmem>>, vector<1x128x128xbf16>
    %64 = vector.shape_cast %63 : vector<1x128x128xbf16> to vector<128x128xbf16>
    %cst_33 = arith.constant dense<0.000000e+00> : vector<8x128xf32>
    %65 = tpu.matmul %62, %64, %cst_33 {dimension_numbers = #tpu.dot_dimension_numbers<[1], [0], [0], [1], [0, 0, 1, 1], [], []>} : vector<8x128xbf16>, vector<128x128xbf16>, vector<8x128xf32> -> vector<8x128xf32>
    %c0_34 = arith.constant 0 : index
    %c0_35 = arith.constant 0 : index
    %c0_36 = arith.constant 0 : index
    %66 = vector.load %arg5[%c0_34, %c0_35, %c0_36] : memref<1x1x128xf32, #tpu.memory_space<vmem>>, vector<1x1x128xf32>
    %67 = vector.shape_cast %66 : vector<1x1x128xf32> to vector<1x128xf32>
    %68 = vector.broadcast %67 : vector<1x128xf32> to vector<8x128xf32>
    %69 = arith.addf %65, %68 : vector<8x128xf32>
    %cst_37 = arith.constant dense<0.000000e+00> : vector<8xf32>
    %70 = vector.multi_reduction <add>, %69, %cst_37 [1] : vector<8x128xf32> to vector<8xf32>
    %71 = vector.shape_cast %70 : vector<8xf32> to vector<8x1xf32>
    %cst_38 = arith.constant 1.280000e+02 : f32
    %72 = vector.broadcast %cst_38 : f32 to vector<8x1xf32>
    %73 = arith.divf %71, %72 : vector<8x1xf32>
    %74 = arith.mulf %69, %69 : vector<8x128xf32>
    %cst_39 = arith.constant dense<0.000000e+00> : vector<8xf32>
    %75 = vector.multi_reduction <add>, %74, %cst_39 [1] : vector<8x128xf32> to vector<8xf32>
    %76 = vector.shape_cast %75 : vector<8xf32> to vector<8x1xf32>
    %cst_40 = arith.constant 1.280000e+02 : f32
    %77 = vector.broadcast %cst_40 : f32 to vector<8x1xf32>
    %78 = arith.divf %76, %77 : vector<8x1xf32>
    %79 = arith.mulf %73, %73 : vector<8x1xf32>
    %80 = arith.subf %78, %79 : vector<8x1xf32>
    %81 = vector.broadcast %73 : vector<8x1xf32> to vector<8x128xf32>
    %82 = arith.subf %69, %81 : vector<8x128xf32>
    %cst_41 = arith.constant 9.99999974E-6 : f32
    %83 = vector.broadcast %cst_41 : f32 to vector<8x1xf32>
    %84 = arith.addf %80, %83 : vector<8x1xf32>
    %85 = math.rsqrt %84 : vector<8x1xf32>
    %86 = vector.broadcast %85 : vector<8x1xf32> to vector<8x128xf32>
    %87 = arith.mulf %82, %86 : vector<8x128xf32>
    %88 = arith.truncf %87 : vector<8x128xf32> to vector<8x128xbf16>
    %c1 = arith.constant 1 : index
    %c0_42 = arith.constant 0 : index
    %c0_43 = arith.constant 0 : index
    %89 = vector.load %arg6[%c1, %c0_42, %c0_43] : memref<2x128x256xbf16, #tpu.memory_space<vmem>>, vector<1x128x256xbf16>
    %90 = vector.shape_cast %89 : vector<1x128x256xbf16> to vector<128x256xbf16>
    %cst_44 = arith.constant dense<0.000000e+00> : vector<8x256xf32>
    %91 = tpu.matmul %88, %90, %cst_44 {dimension_numbers = #tpu.dot_dimension_numbers<[1], [0], [0], [1], [0, 0, 1, 1], [], []>} : vector<8x128xbf16>, vector<128x256xbf16>, vector<8x256xf32> -> vector<8x256xf32>
    %c1_45 = arith.constant 1 : index
    %c0_46 = arith.constant 0 : index
    %c0_47 = arith.constant 0 : index
    %92 = vector.load %arg7[%c1_45, %c0_46, %c0_47] : memref<2x1x256xf32, #tpu.memory_space<vmem>>, vector<1x1x256xf32>
    %93 = vector.shape_cast %92 : vector<1x1x256xf32> to vector<1x256xf32>
    %94 = vector.broadcast %93 : vector<1x256xf32> to vector<8x256xf32>
    %95 = arith.addf %91, %94 : vector<8x256xf32>
    %cst_48 = arith.constant 0.000000e+00 : f32
    %96 = vector.broadcast %cst_48 : f32 to vector<8x256xf32>
    %97 = arith.maximumf %95, %96 : vector<8x256xf32>
    %98 = arith.truncf %97 : vector<8x256xf32> to vector<8x256xbf16>
    %c1_49 = arith.constant 1 : index
    %c0_50 = arith.constant 0 : index
    %c0_51 = arith.constant 0 : index
    %99 = vector.load %arg8[%c1_49, %c0_50, %c0_51] : memref<2x256x128xbf16, #tpu.memory_space<vmem>>, vector<1x256x128xbf16>
    %100 = vector.shape_cast %99 : vector<1x256x128xbf16> to vector<256x128xbf16>
    %cst_52 = arith.constant dense<0.000000e+00> : vector<8x128xf32>
    %101 = tpu.matmul %98, %100, %cst_52 {dimension_numbers = #tpu.dot_dimension_numbers<[1], [0], [0], [1], [0, 0, 1, 1], [], []>} : vector<8x256xbf16>, vector<256x128xbf16>, vector<8x128xf32> -> vector<8x128xf32>
    %c1_53 = arith.constant 1 : index
    %c0_54 = arith.constant 0 : index
    %c0_55 = arith.constant 0 : index
    %102 = vector.load %arg9[%c1_53, %c0_54, %c0_55] : memref<2x1x128xf32, #tpu.memory_space<vmem>>, vector<1x1x128xf32>
    %103 = vector.shape_cast %102 : vector<1x1x128xf32> to vector<1x128xf32>
    %104 = vector.broadcast %103 : vector<1x128xf32> to vector<8x128xf32>
    %105 = arith.addf %101, %104 : vector<8x128xf32>
    %106 = arith.addf %87, %105 : vector<8x128xf32>
    %cst_56 = arith.constant dense<0.000000e+00> : vector<8xf32>
    %107 = vector.multi_reduction <add>, %106, %cst_56 [1] : vector<8x128xf32> to vector<8xf32>
    %108 = vector.shape_cast %107 : vector<8xf32> to vector<8x1xf32>
    %cst_57 = arith.constant 1.280000e+02 : f32
    %109 = vector.broadcast %cst_57 : f32 to vector<8x1xf32>
    %110 = arith.divf %108, %109 : vector<8x1xf32>
    %111 = arith.mulf %106, %106 : vector<8x128xf32>
    %cst_58 = arith.constant dense<0.000000e+00> : vector<8xf32>
    %112 = vector.multi_reduction <add>, %111, %cst_58 [1] : vector<8x128xf32> to vector<8xf32>
    %113 = vector.shape_cast %112 : vector<8xf32> to vector<8x1xf32>
    %cst_59 = arith.constant 1.280000e+02 : f32
    %114 = vector.broadcast %cst_59 : f32 to vector<8x1xf32>
    %115 = arith.divf %113, %114 : vector<8x1xf32>
    %116 = arith.mulf %110, %110 : vector<8x1xf32>
    %117 = arith.subf %115, %116 : vector<8x1xf32>
    %118 = vector.broadcast %110 : vector<8x1xf32> to vector<8x128xf32>
    %119 = arith.subf %106, %118 : vector<8x128xf32>
    %cst_60 = arith.constant 9.99999974E-6 : f32
    %120 = vector.broadcast %cst_60 : f32 to vector<8x1xf32>
    %121 = arith.addf %117, %120 : vector<8x1xf32>
    %122 = math.rsqrt %121 : vector<8x1xf32>
    %123 = vector.broadcast %122 : vector<8x1xf32> to vector<8x128xf32>
    %124 = arith.mulf %119, %123 : vector<8x128xf32>
    %125 = arith.truncf %124 : vector<8x128xf32> to vector<8x128xbf16>
    %c0_61 = arith.constant 0 : index
    %c0_62 = arith.constant 0 : index
    %126 = vector.load %arg10[%c0_61, %c0_62] : memref<128x128xbf16, #tpu.memory_space<vmem>>, vector<128x128xbf16>
    %cst_63 = arith.constant dense<0.000000e+00> : vector<8x128xf32>
    %127 = tpu.matmul %125, %126, %cst_63 {dimension_numbers = #tpu.dot_dimension_numbers<[1], [0], [0], [1], [0, 0, 1, 1], [], []>} : vector<8x128xbf16>, vector<128x128xbf16>, vector<8x128xf32> -> vector<8x128xf32>
    %c0_64 = arith.constant 0 : index
    %c0_65 = arith.constant 0 : index
    %128 = vector.load %arg11[%c0_64, %c0_65] : memref<1x128xf32, #tpu.memory_space<vmem>>, vector<1x128xf32>
    %129 = vector.broadcast %128 : vector<1x128xf32> to vector<8x128xf32>
    %130 = arith.addf %127, %129 : vector<8x128xf32>
    %c0_66 = arith.constant 0 : index
    %c0_67 = arith.constant 0 : index
    %131 = vector.load %arg12[%c0_66, %c0_67] : memref<8x128xf32, #tpu.memory_space<vmem>>, vector<8x128xf32>
    tpu.vector_store %arg12[%c0_66, %c0_67], %130 {strides = array<i32>} : memref<8x128xf32, #tpu.memory_space<vmem>>, vector<8x128xf32>,
    return
  }
  func.func @transform_0(%arg0: i32) -> (i32, i32) {
    %c0_i32 = arith.constant 0 : i32
    %c0_i32_0 = arith.constant 0 : i32
    return %arg0, %c0_i32 : i32, i32
  }
  func.func @transform_1(%arg0: i32) -> (i32, i32) {
    %c0_i32 = arith.constant 0 : i32
    %c0_i32_0 = arith.constant 0 : i32
    %c0_i32_1 = arith.constant 0 : i32
    return %c0_i32, %c0_i32_0 : i32, i32
  }
  func.func @transform_2(%arg0: i32) -> (i32, i32) {
    %c0_i32 = arith.constant 0 : i32
    %c0_i32_0 = arith.constant 0 : i32
    %c0_i32_1 = arith.constant 0 : i32
    return %c0_i32, %c0_i32_0 : i32, i32
  }
  func.func @transform_3(%arg0: i32) -> (i32, i32, i32) {
    %c0_i32 = arith.constant 0 : i32
    %c0_i32_0 = arith.constant 0 : i32
    %c0_i32_1 = arith.constant 0 : i32
    %c0_i32_2 = arith.constant 0 : i32
    return %c0_i32, %c0_i32_0, %c0_i32_1 : i32, i32, i32
  }
  func.func @transform_4(%arg0: i32) -> (i32, i32, i32) {
    %c0_i32 = arith.constant 0 : i32
    %c0_i32_0 = arith.constant 0 : i32
    %c0_i32_1 = arith.constant 0 : i32
    %c0_i32_2 = arith.constant 0 : i32
    return %c0_i32, %c0_i32_0, %c0_i32_1 : i32, i32, i32
  }
  func.func @transform_5(%arg0: i32) -> (i32, i32, i32) {
    %c0_i32 = arith.constant 0 : i32
    %c0_i32_0 = arith.constant 0 : i32
    %c0_i32_1 = arith.constant 0 : i32
    %c0_i32_2 = arith.constant 0 : i32
    return %c0_i32, %c0_i32_0, %c0_i32_1 : i32, i32, i32
  }
  func.func @transform_6(%arg0: i32) -> (i32, i32, i32) {
    %c0_i32 = arith.constant 0 : i32
    %c0_i32_0 = arith.constant 0 : i32
    %c0_i32_1 = arith.constant 0 : i32
    %c0_i32_2 = arith.constant 0 : i32
    return %c0_i32, %c0_i32_0, %c0_i32_1 : i32, i32, i32
  }
  func.func @transform_7(%arg0: i32) -> (i32, i32, i32) {
    %c0_i32 = arith.constant 0 : i32
    %c0_i32_0 = arith.constant 0 : i32
    %c0_i32_1 = arith.constant 0 : i32
    %c0_i32_2 = arith.constant 0 : i32
    return %c0_i32, %c0_i32_0, %c0_i32_1 : i32, i32, i32
  }
  func.func @transform_8(%arg0: i32) -> (i32, i32, i32) {
    %c0_i32 = arith.constant 0 : i32
    %c0_i32_0 = arith.constant 0 : i32
    %c0_i32_1 = arith.constant 0 : i32
    %c0_i32_2 = arith.constant 0 : i32
    return %c0_i32, %c0_i32_0, %c0_i32_1 : i32, i32, i32
  }
  func.func @transform_9(%arg0: i32) -> (i32, i32) {
    %c0_i32 = arith.constant 0 : i32
    %c0_i32_0 = arith.constant 0 : i32
    %c0_i32_1 = arith.constant 0 : i32
    return %c0_i32, %c0_i32_0 : i32, i32
  }
  func.func @transform_10(%arg0: i32) -> (i32, i32) {
    %c0_i32 = arith.constant 0 : i32
    %c0_i32_0 = arith.constant 0 : i32
    %c0_i32_1 = arith.constant 0 : i32
    return %c0_i32, %c0_i32_0 : i32, i32
  }
  func.func @transform_11(%arg0: i32) -> (i32, i32) {
    %c0_i32 = arith.constant 0 : i32
    %c0_i32_0 = arith.constant 0 : i32
    return %arg0, %c0_i32 : i32, i32
  }
}

</mosaic_0001>

<llo_original>
// kernel: tpu_custom_call.1
$region0: #{tpu_custom_call.1}
  #allocation0 [shape = 'u32[]', space=smem, size = 0x4, offset = 0x4, fixed_abs, tag = 'smem constant byte address 0x4 - core index']
  #allocation1 [shape = 'u32[72,128]{1,0:T(1,128)}', space=vmem, size = 0x9000, scoped, tag = 'internal scratch']
  %s0 = inlined_call_operand.hbm [shape: f32[8,128], index: 0, kind: input, shape index: {}]
  %s1 = inlined_call_operand.hbm [shape: bf16[128,128], index: 1, kind: input, shape index: {}]
  %s2 = inlined_call_operand.hbm [shape: f32[1,128], index: 2, kind: input, shape index: {}]
  %s3 = inlined_call_operand.hbm [shape: bf16[1,128,128], index: 3, kind: input, shape index: {}]
  %s4 = inlined_call_operand.hbm [shape: f32[1,1,128], index: 4, kind: input, shape index: {}]
  %s5 = inlined_call_operand.hbm [shape: bf16[2,128,256], index: 5, kind: input, shape index: {}]
  %s6 = inlined_call_operand.vmem [shape: f32[2,1,256], index: 6, kind: input, shape index: {}]
  %s7 = inlined_call_operand.hbm [shape: bf16[2,256,128], index: 7, kind: input, shape index: {}]
  %s8 = inlined_call_operand.vmem [shape: f32[2,1,128], index: 8, kind: input, shape index: {}]
  %s9 = inlined_call_operand.hbm [shape: bf16[128,128], index: 9, kind: input, shape index: {}]
  %s10 = inlined_call_operand.vmem [shape: f32[1,128], index: 10, kind: input, shape index: {}]
  %s11 = inlined_call_operand.hbm [shape: f32[8,128], index: 11, kind: output, shape index: {}]
  %s12 = sld [smem:[#allocation0]]
  $region86: #{tpu_custom_call.1} parent=0
    _
  %s14 = ssub.s32 1, %s12
  %s15 = scalar_select 0, %s14, %s12
  $region1: #{tpu_custom_call.1} parent=0
    #allocation2 [shape = 'u8[4096]{0}', space=vmem, size = 0x1000, scoped, tag = 'input window, operand 0, single buffered']
    #allocation3 [shape = 's32[1]{0}', space=sflag, size = 0x4, scoped, tag = 'scoped memory for tpu_custom_call.1']
    #allocation4 [shape = 's32[1]{0}', space=sflag, size = 0x4, scoped, tag = 'scoped memory for tpu_custom_call.1']
    #allocation5 [shape = 'u8[32768]{0}', space=vmem, size = 0x8000, scoped, tag = 'input window, operand 1, single buffered']
    #allocation6 [shape = 's32[1]{0}', space=sflag, size = 0x4, scoped, tag = 'scoped memory for tpu_custom_call.1']
    #allocation7 [shape = 'u8[512]{0}', space=vmem, size = 0x400, scoped, tag = 'input window, operand 2, single buffered']
    #allocation8 [shape = 'u8[32768]{0}', space=vmem, size = 0x8000, scoped, tag = 'input window, operand 3, single buffered']
    #allocation9 [shape = 's32[1]{0}', space=sflag, size = 0x4, scoped, tag = 'scoped memory for tpu_custom_call.1']
    #allocation10 [shape = 'u8[512]{0}', space=vmem, size = 0x400, scoped, tag = 'input window, operand 4, single buffered']
    #allocation11 [shape = 'u8[131072]{0}', space=vmem, size = 0x20000, scoped, tag = 'input window, operand 5, single buffered']
    #allocation12 [shape = 's32[1]{0}', space=sflag, size = 0x4, scoped, tag = 'scoped memory for tpu_custom_call.1']
    #allocation13 [shape = 'u8[131072]{0}', space=vmem, size = 0x20000, scoped, tag = 'input window, operand 7, single buffered']
    #allocation14 [shape = 'u8[32768]{0}', space=vmem, size = 0x8000, scoped, tag = 'input window, operand 9, single buffered']
    #allocation15 [shape = 's32[1]{0}', space=sflag, size = 0x4, scoped, tag = 'scoped memory for tpu_custom_call.1']
    #allocation16 [shape = 'u8[4096]{0}', space=vmem, size = 0x1000, scoped, tag = 'output window, operand 0, single buffered']
    %16 = vsyncpa [#allocation3], 0
    %17 = vsyncpa [#allocation6], 0
    %18 = vsyncpa [#allocation9], 0
    %19 = vsyncpa [#allocation12], 0
    %20 = vsyncpa [#allocation15], 0
    %21 = vsyncpa [#allocation4], 0
    // Predicated region
    $region2: #{tpu_custom_call.1} parent=1 // pred_check
      _
    $region3: #{tpu_custom_call.1} parent=1 // pred_check_branch
      %23 = sbr.rel (0) target = $region5
    $region4: #{tpu_custom_call.1} parent=1 // pred_region
      %25 = vsyncadd [#allocation3], 0
      %s27 = sshll.u32 %s0, 4
      %s28 = int_to_ptr.hbm [resolvable:$true] %s27
      %s29 = sshll.u32 [#allocation2], 4
      %s30 = int_to_ptr.vmem [resolvable:$true] %s29
      %32 = dma.hbm_to_vmem [thread:$0]  %s28, 128, %s30, [#allocation3]
    $region5: #{tpu_custom_call.1} parent=1 // pred_fallthru
      _
    // Predicated region
    $region6: #{tpu_custom_call.1} parent=1 // pred_check
      _
    $region7: #{tpu_custom_call.1} parent=1 // pred_check_branch
      %34 = sbr.rel (0) target = $region9
    $region8: #{tpu_custom_call.1} parent=1 // pred_region
      %36 = vsyncadd [#allocation6], 0
      %s37 = sshll.u32 %s1, 4
      %s38 = int_to_ptr.hbm [resolvable:$true] %s37
      %s39 = sshll.u32 [#allocation5], 4
      %s40 = int_to_ptr.vmem [resolvable:$true] %s39
      %45 = dma.hbm_to_vmem [thread:$0]  %s38, 1024, %s40, [#allocation6], 64, 64, 4
    $region9: #{tpu_custom_call.1} parent=1 // pred_fallthru
      _
    // Predicated region
    $region10: #{tpu_custom_call.1} parent=1 // pred_check
      _
    $region11: #{tpu_custom_call.1} parent=1 // pred_check_branch
      %47 = sbr.rel (0) target = $region13
    $region12: #{tpu_custom_call.1} parent=1 // pred_region
      %49 = vsyncadd [#allocation6], 0
      %s51 = sshll.u32 %s2, 4
      %s52 = int_to_ptr.hbm [resolvable:$true] %s51
      %s53 = sshll.u32 [#allocation7], 4
      %s54 = int_to_ptr.vmem [resolvable:$true] %s53
      %56 = dma.hbm_to_vmem [thread:$0]  %s52, 16, %s54, [#allocation6]
    $region13: #{tpu_custom_call.1} parent=1 // pred_fallthru
      _
    // Predicated region
    $region14: #{tpu_custom_call.1} parent=1 // pred_check
      _
    $region15: #{tpu_custom_call.1} parent=1 // pred_check_branch
      %58 = sbr.rel (0) target = $region17
    $region16: #{tpu_custom_call.1} parent=1 // pred_region
      %60 = vsyncadd [#allocation9], 0
      %s61 = sshll.u32 %s3, 4
      %s62 = int_to_ptr.hbm [resolvable:$true] %s61
      %s63 = sshll.u32 [#allocation8], 4
      %s64 = int_to_ptr.vmem [resolvable:$true] %s63
      %69 = dma.hbm_to_vmem [thread:$0]  %s62, 1024, %s64, [#allocation9], 64, 64, 4
    $region17: #{tpu_custom_call.1} parent=1 // pred_fallthru
      _
    // Predicated region
    $region18: #{tpu_custom_call.1} parent=1 // pred_check
      _
    $region19: #{tpu_custom_call.1} parent=1 // pred_check_branch
      %71 = sbr.rel (0) target = $region21
    $region20: #{tpu_custom_call.1} parent=1 // pred_region
      %73 = vsyncadd [#allocation9], 0
      %s75 = sshll.u32 %s4, 4
      %s76 = int_to_ptr.hbm [resolvable:$true] %s75
      %s77 = sshll.u32 [#allocation10], 4
      %s78 = int_to_ptr.vmem [resolvable:$true] %s77
      %80 = dma.hbm_to_vmem [thread:$0]  %s76, 16, %s78, [#allocation9]
    $region21: #{tpu_custom_call.1} parent=1 // pred_fallthru
      _
    // Predicated region
    $region22: #{tpu_custom_call.1} parent=1 // pred_check
      _
    $region23: #{tpu_custom_call.1} parent=1 // pred_check_branch
      %82 = sbr.rel (0) target = $region25
    $region24: #{tpu_custom_call.1} parent=1 // pred_region
      %84 = vsyncadd [#allocation12], 0
      %s85 = sshll.u32 %s5, 4
      %s86 = int_to_ptr.hbm [resolvable:$true] %s85
      %s87 = sshll.u32 [#allocation11], 4
      %s88 = int_to_ptr.vmem [resolvable:$true] %s87
      %93 = dma.hbm_to_vmem [thread:$0]  %s86, 4096, %s88, [#allocation12], 128, 128, 8
    $region25: #{tpu_custom_call.1} parent=1 // pred_fallthru
      _
    // Predicated region
    $region26: #{tpu_custom_call.1} parent=1 // pred_check
      _
    $region27: #{tpu_custom_call.1} parent=1 // pred_check_branch
      %95 = sbr.rel (0) target = $region29
    $region28: #{tpu_custom_call.1} parent=1 // pred_region
      _
    $region29: #{tpu_custom_call.1} parent=1 // pred_fallthru
      _
    // Predicated region
    $region30: #{tpu_custom_call.1} parent=1 // pred_check
      _
    $region31: #{tpu_custom_call.1} parent=1 // pred_check_branch
      %97 = sbr.rel (0) target = $region33
    $region32: #{tpu_custom_call.1} parent=1 // pred_region
      %99 = vsyncadd [#allocation12], 0
      %s100 = sshll.u32 %s7, 4
      %s101 = int_to_ptr.hbm [resolvable:$true] %s100
      %s102 = sshll.u32 [#allocation13], 4
      %s103 = int_to_ptr.vmem [resolvable:$true] %s102
      %108 = dma.hbm_to_vmem [thread:$0]  %s101, 4096, %s103, [#allocation12], 64, 64, 4
    $region33: #{tpu_custom_call.1} parent=1 // pred_fallthru
      _
    // Predicated region
    $region34: #{tpu_custom_call.1} parent=1 // pred_check
      _
    $region35: #{tpu_custom_call.1} parent=1 // pred_check_branch
      %110 = sbr.rel (0) target = $region37
    $region36: #{tpu_custom_call.1} parent=1 // pred_region
      _
    $region37: #{tpu_custom_call.1} parent=1 // pred_fallthru
      _
    // Predicated region
    $region38: #{tpu_custom_call.1} parent=1 // pred_check
      _
    $region39: #{tpu_custom_call.1} parent=1 // pred_check_branch
      %112 = sbr.rel (0) target = $region41
    $region40: #{tpu_custom_call.1} parent=1 // pred_region
      %114 = vsyncadd [#allocation15], 0
      %s115 = sshll.u32 %s9, 4
      %s116 = int_to_ptr.hbm [resolvable:$true] %s115
      %s117 = sshll.u32 [#allocation14], 4
      %s118 = int_to_ptr.vmem [resolvable:$true] %s117
      %123 = dma.hbm_to_vmem [thread:$0]  %s116, 1024, %s118, [#allocation15], 64, 64, 4
    $region41: #{tpu_custom_call.1} parent=1 // pred_fallthru
      _
    // Predicated region
    $region42: #{tpu_custom_call.1} parent=1 // pred_check
      _
    $region43: #{tpu_custom_call.1} parent=1 // pred_check_branch
      %125 = sbr.rel (0) target = $region45
    $region44: #{tpu_custom_call.1} parent=1 // pred_region
      _
    $region45: #{tpu_custom_call.1} parent=1 // pred_fallthru
      _
    // Predicated region
    $region46: #{tpu_custom_call.1} parent=1 // pred_check
      _
    $region47: #{tpu_custom_call.1} parent=1 // pred_check_branch
      %127 = sbr.rel (0) target = $region49
    $region48: #{tpu_custom_call.1} parent=1 // pred_region
      %129 = dma.done [#allocation3], 128
    $region49: #{tpu_custom_call.1} parent=1 // pred_fallthru
      _
    // Predicated region
    $region50: #{tpu_custom_call.1} parent=1 // pred_check
      _
    $region51: #{tpu_custom_call.1} parent=1 // pred_check_branch
      %131 = sbr.rel (0) target = $region53
    $region52: #{tpu_custom_call.1} parent=1 // pred_region
      %133 = dma.done [#allocation6], 1024
    $region53: #{tpu_custom_call.1} parent=1 // pred_fallthru
      _
    // Predicated region
    $region54: #{tpu_custom_call.1} parent=1 // pred_check
      _
    $region55: #{tpu_custom_call.1} parent=1 // pred_check_branch
      %135 = sbr.rel (0) target = $region57
    $region56: #{tpu_custom_call.1} parent=1 // pred_region
      %137 = dma.done [#allocation6], 16
    $region57: #{tpu_custom_call.1} parent=1 // pred_fallthru
      _
    // Predicated region
    $region58: #{tpu_custom_call.1} parent=1 // pred_check
      _
    $region59: #{tpu_custom_call.1} parent=1 // pred_check_branch
      %139 = sbr.rel (0) target = $region61
    $region60: #{tpu_custom_call.1} parent=1 // pred_region
      %141 = dma.done [#allocation9], 1024
    $region61: #{tpu_custom_call.1} parent=1 // pred_fallthru
      _
    // Predicated region
    $region62: #{tpu_custom_call.1} parent=1 // pred_check
      _
    $region63: #{tpu_custom_call.1} parent=1 // pred_check_branch
      %143 = sbr.rel (0) target = $region65
    $region64: #{tpu_custom_call.1} parent=1 // pred_region
      %145 = dma.done [#allocation9], 16
    $region65: #{tpu_custom_call.1} parent=1 // pred_fallthru
      _
    // Predicated region
    $region66: #{tpu_custom_call.1} parent=1 // pred_check
      _
    $region67: #{tpu_custom_call.1} parent=1 // pred_check_branch
      %147 = sbr.rel (0) target = $region69
    $region68: #{tpu_custom_call.1} parent=1 // pred_region
      %149 = dma.done [#allocation12], 4096
    $region69: #{tpu_custom_call.1} parent=1 // pred_fallthru
      _
    // Predicated region
    $region70: #{tpu_custom_call.1} parent=1 // pred_check
      _
    $region71: #{tpu_custom_call.1} parent=1 // pred_check_branch
      %151 = sbr.rel (0) target = $region73
    $region72: #{tpu_custom_call.1} parent=1 // pred_region
      %153 = dma.done [#allocation12], 4096
    $region73: #{tpu_custom_call.1} parent=1 // pred_fallthru
      _
    // Predicated region
    $region74: #{tpu_custom_call.1} parent=1 // pred_check
      _
    $region75: #{tpu_custom_call.1} parent=1 // pred_check_branch
      %155 = sbr.rel (0) target = $region77
    $region76: #{tpu_custom_call.1} parent=1 // pred_region
      %157 = dma.done [#allocation15], 1024
    $region77: #{tpu_custom_call.1} parent=1 // pred_fallthru
      _
    %v158 = vld [vmem:[#allocation2] sm:$0xff]
    %v159 = vpack.c.bf16 %v158, %v158
    %v160 = vld [vmem:[#allocation5] sm:$0xf]
    %v161 = vld [vmem:[#allocation5 + $0x4] sm:$0xf]
    %v162 = vld [vmem:[#allocation5 + $0x8] sm:$0xf]
    %v163 = vld [vmem:[#allocation5 + $0xc] sm:$0xf]
    %v164 = vld [vmem:[#allocation5 + $0x10] sm:$0xf]
    %v165 = vld [vmem:[#allocation5 + $0x14] sm:$0xf]
    %v166 = vld [vmem:[#allocation5 + $0x18] sm:$0xf]
    %v167 = vld [vmem:[#allocation5 + $0x1c] sm:$0xf]
    %v168 = vld [vmem:[#allocation5 + $0x20] sm:$0xf]
    %v169 = vld [vmem:[#allocation5 + $0x24] sm:$0xf]
    %v170 = vld [vmem:[#allocation5 + $0x28] sm:$0xf]
    %v171 = vld [vmem:[#allocation5 + $0x2c] sm:$0xf]
    %v172 = vld [vmem:[#allocation5 + $0x30] sm:$0xf]
    %v173 = vld [vmem:[#allocation5 + $0x34] sm:$0xf]
    %v174 = vld [vmem:[#allocation5 + $0x38] sm:$0xf]
    %v175 = vld [vmem:[#allocation5 + $0x3c] sm:$0xf]
    %v176 = vld [vmem:[#allocation7] sm:$0x1]
    %v178 = vperm.slane %v176, 0
    %v196 = vunpack.c.l.b16 %v160
    %v197 = vunpack.c.l.b16 %v161
    %v198 = vunpack.c.l.b16 %v162
    %v199 = vunpack.c.l.b16 %v163
    %v200 = vunpack.c.l.b16 %v164
    %v201 = vunpack.c.l.b16 %v165
    %v202 = vunpack.c.l.b16 %v166
    %v203 = vunpack.c.l.b16 %v167
    %v204 = vunpack.c.l.b16 %v168
    %v205 = vunpack.c.l.b16 %v169
    %v206 = vunpack.c.l.b16 %v170
    %v207 = vunpack.c.l.b16 %v171
    %v208 = vunpack.c.l.b16 %v172
    %v209 = vunpack.c.l.b16 %v173
    %v210 = vunpack.c.l.b16 %v174
    %v211 = vunpack.c.l.b16 %v175
    %v212 = vpack.c.b16 %v197, %v196
    %v213 = vpack.c.b16 %v199, %v198
    %v214 = vpack.c.b16 %v201, %v200
    %v215 = vpack.c.b16 %v203, %v202
    %v216 = vpack.c.b16 %v205, %v204
    %v217 = vpack.c.b16 %v207, %v206
    %v218 = vpack.c.b16 %v209, %v208
    %v219 = vpack.c.b16 %v211, %v210
    %228 = vmatpush.bf16.msra.mxu0 %v219
    %229 = vmatpush.bf16.msra.mxu0 %v218
    %230 = vmatpush.bf16.msra.mxu0 %v217
    %231 = vmatpush.bf16.msra.mxu0 %v216
    %232 = vmatpush.bf16.msra.mxu0 %v215
    %233 = vmatpush.bf16.msra.mxu0 %v214
    %234 = vmatpush.bf16.msra.mxu0 %v213
    %235 = vmatpush.bf16.msra.mxu0 %v212
    %236 = vmatmul.bf16.gmra.mxu0 %v159
    %v237 = vpop.f32.mrf.mxu0
    %v238 = vadd.f32 %v178, %v237
    %v239 = vpop.f32.mrf.mxu0
    %240 = vdwg.mxu0
    %241 = vadd.xlane.f32.xlu0 %v238
    %v242 = vpop.xlane.xlu0 %241
    %v243 = vrcp.pop 128.0
    %v244 = vmul.f32 128.0, %v243
    %v245 = vsub.f32 1.0, %v244
    %v246 = vmul.f32 %v243, %v245
    %v247 = vadd.f32 %v243, %v246
    %vm248 = vweird.f32 %v243
    %v249 = vsel %vm248, %v243, %v247
    %v250 = vmul.f32 %v242, %v249
    %v251 = vmul.f32 %v238, %v238
    %252 = vadd.xlane.f32.xlu0 %v251
    %v253 = vpop.xlane.xlu0 %252
    %v254 = vmul.f32 %v253, %v249
    %v255 = vmul.f32 %v250, %v250
    %v256 = vsub.f32 %v254, %v255
    %v257 = vsub.f32 %v238, %v250
    %v258 = vadd.f32 %v256, 1e-05
    %v259 = vrsqrt.pop %v258
    %v260 = vmul.f32 %v259, %v258
    %v261 = vmul.f32 %v260, %v259
    %v262 = vmul.f32 0.5, %v261
    %v263 = vsub.f32 1.5, %v262
    %v264 = vmul.f32 %v259, %v263
    %vm265 = vweird.f32 %v258
    %vm266 = vweird.f32 %v259
    %vm267 = vmor %vm265, %vm266
    %v268 = vsel %vm267, %v259, %v264
    %v269 = vmul.f32 %v257, %v268
    %v270 = vpack.c.bf16 %v269, %v269
    %v271 = vld [vmem:[#allocation11] sm:$0xff]
    %v272 = vld [vmem:[#allocation11 + $0x8] sm:$0xff]
    %v273 = vld [vmem:[#allocation11 + $0x10] sm:$0xff]
    %v274 = vld [vmem:[#allocation11 + $0x18] sm:$0xff]
    %v275 = vld [vmem:[#allocation11 + $0x20] sm:$0xff]
    %v276 = vld [vmem:[#allocation11 + $0x28] sm:$0xff]
    %v277 = vld [vmem:[#allocation11 + $0x30] sm:$0xff]
    %v278 = vld [vmem:[#allocation11 + $0x38] sm:$0xff]
    %v279 = vld [vmem:[#allocation11 + $0x40] sm:$0xff]
    %v280 = vld [vmem:[#allocation11 + $0x48] sm:$0xff]
    %v281 = vld [vmem:[#allocation11 + $0x50] sm:$0xff]
    %v282 = vld [vmem:[#allocation11 + $0x58] sm:$0xff]
    %v283 = vld [vmem:[#allocation11 + $0x60] sm:$0xff]
    %v284 = vld [vmem:[#allocation11 + $0x68] sm:$0xff]
    %v285 = vld [vmem:[#allocation11 + $0x70] sm:$0xff]
    %v286 = vld [vmem:[#allocation11 + $0x78] sm:$0xff]
    %v287 = vld [vmem:[%s6] sm:$0x3]
    %v289 = vperm.slane %v287, 0
    %v290 = vperm.slane %v287, 1
    %v309 = vunpack.c.l.b16 %v271
    %v310 = vunpack.c.h.b16 %v271
    %v311 = vunpack.c.l.b16 %v272
    %v312 = vunpack.c.h.b16 %v272
    %v313 = vunpack.c.l.b16 %v273
    %v314 = vunpack.c.h.b16 %v273
    %v315 = vunpack.c.l.b16 %v274
    %v316 = vunpack.c.h.b16 %v274
    %v317 = vunpack.c.l.b16 %v275
    %v318 = vunpack.c.h.b16 %v275
    %v319 = vunpack.c.l.b16 %v276
    %v320 = vunpack.c.h.b16 %v276
    %v321 = vunpack.c.l.b16 %v277
    %v322 = vunpack.c.h.b16 %v277
    %v323 = vunpack.c.l.b16 %v278
    %v324 = vunpack.c.h.b16 %v278
    %v325 = vunpack.c.l.b16 %v279
    %v326 = vunpack.c.h.b16 %v279
    %v327 = vunpack.c.l.b16 %v280
    %v328 = vunpack.c.h.b16 %v280
    %v329 = vunpack.c.l.b16 %v281
    %v330 = vunpack.c.h.b16 %v281
    %v331 = vunpack.c.l.b16 %v282
    %v332 = vunpack.c.h.b16 %v282
    %v333 = vunpack.c.l.b16 %v283
    %v334 = vunpack.c.h.b16 %v283
    %v335 = vunpack.c.l.b16 %v284
    %v336 = vunpack.c.h.b16 %v284
    %v337 = vunpack.c.l.b16 %v285
    %v338 = vunpack.c.h.b16 %v285
    %v339 = vunpack.c.l.b16 %v286
    %v340 = vunpack.c.h.b16 %v286
    %v341 = vpack.c.b16 %v311, %v309
    %v342 = vpack.c.b16 %v312, %v310
    %v343 = vpack.c.b16 %v315, %v313
    %v344 = vpack.c.b16 %v316, %v314
    %v345 = vpack.c.b16 %v319, %v317
    %v346 = vpack.c.b16 %v320, %v318
    %v347 = vpack.c.b16 %v323, %v321
    %v348 = vpack.c.b16 %v324, %v322
    %v349 = vpack.c.b16 %v327, %v325
    %v350 = vpack.c.b16 %v328, %v326
    %v351 = vpack.c.b16 %v331, %v329
    %v352 = vpack.c.b16 %v332, %v330
    %v353 = vpack.c.b16 %v335, %v333
    %v354 = vpack.c.b16 %v336, %v334
    %v355 = vpack.c.b16 %v339, %v337
    %v356 = vpack.c.b16 %v340, %v338
    %373 = vmatpush.bf16.msra.mxu0 %v355
    %374 = vmatpush.bf16.msra.mxu0 %v353
    %375 = vmatpush.bf16.msra.mxu0 %v351
    %376 = vmatpush.bf16.msra.mxu0 %v349
    %377 = vmatpush.bf16.msra.mxu0 %v347
    %378 = vmatpush.bf16.msra.mxu0 %v345
    %379 = vmatpush.bf16.msra.mxu0 %v343
    %380 = vmatpush.bf16.msra.mxu0 %v341
    %381 = vmatmul.bf16.gmra.mxu0 %v270
    %v382 = vpop.f32.mrf.mxu0
    %v383 = vadd.f32 %v289, %v382
    %v384 = vpop.f32.mrf.mxu0
    %385 = vdwg.mxu0
    %386 = vmatpush.bf16.msra.mxu0 %v356
    %387 = vmatpush.bf16.msra.mxu0 %v354
    %388 = vmatpush.bf16.msra.mxu0 %v352
    %389 = vmatpush.bf16.msra.mxu0 %v350
    %390 = vmatpush.bf16.msra.mxu0 %v348
    %391 = vmatpush.bf16.msra.mxu0 %v346
    %392 = vmatpush.bf16.msra.mxu0 %v344
    %393 = vmatpush.bf16.msra.mxu0 %v342
    %394 = vmatmul.bf16.gmra.mxu0 %v270
    %v395 = vpop.f32.mrf.mxu0
    %v396 = vadd.f32 %v290, %v395
    %v397 = vpop.f32.mrf.mxu0
    %398 = vdwg.mxu0
    %v399 = vmax.f32 %v383, 0.0
    %v400 = vmax.f32 %v396, 0.0
    %v401 = vpack.c.bf16 %v399, %v399
    %v402 = vpack.c.bf16 %v400, %v400
    %v403 = vld [vmem:[#allocation13] sm:$0xf]
    %v404 = vld [vmem:[#allocation13 + $0x4] sm:$0xf]
    %v405 = vld [vmem:[#allocation13 + $0x8] sm:$0xf]
    %v406 = vld [vmem:[#allocation13 + $0xc] sm:$0xf]
    %v407 = vld [vmem:[#allocation13 + $0x10] sm:$0xf]
    %v408 = vld [vmem:[#allocation13 + $0x14] sm:$0xf]
    %v409 = vld [vmem:[#allocation13 + $0x18] sm:$0xf]
    %v410 = vld [vmem:[#allocation13 + $0x1c] sm:$0xf]
    %v411 = vld [vmem:[#allocation13 + $0x20] sm:$0xf]
    %v412 = vld [vmem:[#allocation13 + $0x24] sm:$0xf]
    %v413 = vld [vmem:[#allocation13 + $0x28] sm:$0xf]
    %v414 = vld [vmem:[#allocation13 + $0x2c] sm:$0xf]
    %v415 = vld [vmem:[#allocation13 + $0x30] sm:$0xf]
    %v416 = vld [vmem:[#allocation13 + $0x34] sm:$0xf]
    %v417 = vld [vmem:[#allocation13 + $0x38] sm:$0xf]
    %v418 = vld [vmem:[#allocation13 + $0x3c] sm:$0xf]
    %v419 = vld [vmem:[#allocation13 + $0x40] sm:$0xf]
    %v420 = vld [vmem:[#allocation13 + $0x44] sm:$0xf]
    %v421 = vld [vmem:[#allocation13 + $0x48] sm:$0xf]
    %v422 = vld [vmem:[#allocation13 + $0x4c] sm:$0xf]
    %v423 = vld [vmem:[#allocation13 + $0x50] sm:$0xf]
    %v424 = vld [vmem:[#allocation13 + $0x54] sm:$0xf]
    %v425 = vld [vmem:[#allocation13 + $0x58] sm:$0xf]
    %v426 = vld [vmem:[#allocation13 + $0x5c] sm:$0xf]
    %v427 = vld [vmem:[#allocation13 + $0x60] sm:$0xf]
    %v428 = vld [vmem:[#allocation13 + $0x64] sm:$0xf]
    %v429 = vld [vmem:[#allocation13 + $0x68] sm:$0xf]
    %v430 = vld [vmem:[#allocation13 + $0x6c] sm:$0xf]
    %v431 = vld [vmem:[#allocation13 + $0x70] sm:$0xf]
    %v432 = vld [vmem:[#allocation13 + $0x74] sm:$0xf]
    %v433 = vld [vmem:[#allocation13 + $0x78] sm:$0xf]
    %v434 = vld [vmem:[#allocation13 + $0x7c] sm:$0xf]
    %v435 = vld [vmem:[%s8] sm:$0x1]
    %v437 = vperm.slane %v435, 0
    %v471 = vunpack.c.l.b16 %v403
    %v472 = vunpack.c.l.b16 %v404
    %v473 = vunpack.c.l.b16 %v405
    %v474 = vunpack.c.l.b16 %v406
    %v475 = vunpack.c.l.b16 %v407
    %v476 = vunpack.c.l.b16 %v408
    %v477 = vunpack.c.l.b16 %v409
    %v478 = vunpack.c.l.b16 %v410
    %v479 = vunpack.c.l.b16 %v411
    %v480 = vunpack.c.l.b16 %v412
    %v481 = vunpack.c.l.b16 %v413
    %v482 = vunpack.c.l.b16 %v414
    %v483 = vunpack.c.l.b16 %v415
    %v484 = vunpack.c.l.b16 %v416
    %v485 = vunpack.c.l.b16 %v417
    %v486 = vunpack.c.l.b16 %v418
    %v487 = vunpack.c.l.b16 %v419
    %v488 = vunpack.c.l.b16 %v420
    %v489 = vunpack.c.l.b16 %v421
    %v490 = vunpack.c.l.b16 %v422
    %v491 = vunpack.c.l.b16 %v423
    %v492 = vunpack.c.l.b16 %v424
    %v493 = vunpack.c.l.b16 %v425
    %v494 = vunpack.c.l.b16 %v426
    %v495 = vunpack.c.l.b16 %v427
    %v496 = vunpack.c.l.b16 %v428
    %v497 = vunpack.c.l.b16 %v429
    %v498 = vunpack.c.l.b16 %v430
    %v499 = vunpack.c.l.b16 %v431
    %v500 = vunpack.c.l.b16 %v432
    %v501 = vunpack.c.l.b16 %v433
    %v502 = vunpack.c.l.b16 %v434
    %v503 = vpack.c.b16 %v472, %v471
    %v504 = vpack.c.b16 %v474, %v473
    %v505 = vpack.c.b16 %v476, %v475
    %v506 = vpack.c.b16 %v478, %v477
    %v507 = vpack.c.b16 %v480, %v479
    %v508 = vpack.c.b16 %v482, %v481
    %v509 = vpack.c.b16 %v484, %v483
    %v510 = vpack.c.b16 %v486, %v485
    %v511 = vpack.c.b16 %v488, %v487
    %v512 = vpack.c.b16 %v490, %v489
    %v513 = vpack.c.b16 %v492, %v491
    %v514 = vpack.c.b16 %v494, %v493
    %v515 = vpack.c.b16 %v496, %v495
    %v516 = vpack.c.b16 %v498, %v497
    %v517 = vpack.c.b16 %v500, %v499
    %v518 = vpack.c.b16 %v502, %v501
    %535 = vmatpush.bf16.msra.mxu0 %v510
    %536 = vmatpush.bf16.msra.mxu0 %v509
    %537 = vmatpush.bf16.msra.mxu0 %v508
    %538 = vmatpush.bf16.msra.mxu0 %v507
    %539 = vmatpush.bf16.msra.mxu0 %v506
    %540 = vmatpush.bf16.msra.mxu0 %v505
    %541 = vmatpush.bf16.msra.mxu0 %v504
    %542 = vmatpush.bf16.msra.mxu0 %v503
    %543 = vmatmul.bf16.gmra.mxu0 %v401
    %v544 = vpop.f32.mrf.mxu0
    %v545 = vadd.f32 %v437, %v544
    %v546 = vpop.f32.mrf.mxu0
    %547 = vdwg.mxu0
    %548 = vmatpush.bf16.msra.mxu0 %v518
    %549 = vmatpush.bf16.msra.mxu0 %v517
    %550 = vmatpush.bf16.msra.mxu0 %v516
    %551 = vmatpush.bf16.msra.mxu0 %v515
    %552 = vmatpush.bf16.msra.mxu0 %v514
    %553 = vmatpush.bf16.msra.mxu0 %v513
    %554 = vmatpush.bf16.msra.mxu0 %v512
    %555 = vmatpush.bf16.msra.mxu0 %v511
    %556 = vmatmul.bf16.gmra.mxu0 %v402
    %v557 = vpop.f32.mrf.mxu0
    %v558 = vadd.f32 %v545, %v557
    %v559 = vpop.f32.mrf.mxu0
    %560 = vdwg.mxu0
    %v561 = vadd.f32 %v269, %v558
    %562 = vadd.xlane.f32.xlu0 %v561
    %v563 = vpop.xlane.xlu0 %562
    %v564 = vmul.f32 %v563, %v249
    %v565 = vmul.f32 %v561, %v561
    %566 = vadd.xlane.f32.xlu0 %v565
    %v567 = vpop.xlane.xlu0 %566
    %v568 = vmul.f32 %v567, %v249
    %v569 = vmul.f32 %v564, %v564
    %v570 = vsub.f32 %v568, %v569
    %v571 = vsub.f32 %v561, %v564
    %v572 = vadd.f32 %v570, 1e-05
    %v573 = vrsqrt.pop %v572
    %v574 = vmul.f32 %v573, %v572
    %v575 = vmul.f32 %v574, %v573
    %v576 = vmul.f32 0.5, %v575
    %v577 = vsub.f32 1.5, %v576
    %v578 = vmul.f32 %v573, %v577
    %vm579 = vweird.f32 %v572
    %vm580 = vweird.f32 %v573
    %vm581 = vmor %vm579, %vm580
    %v582 = vsel %vm581, %v573, %v578
    %v583 = vmul.f32 %v571, %v582
    %v584 = vpack.c.bf16 %v583, %v583
    %v585 = vld [vmem:[#allocation8] sm:$0xf]
    %v586 = vld [vmem:[#allocation8 + $0x4] sm:$0xf]
    %v587 = vld [vmem:[#allocation8 + $0x8] sm:$0xf]
    %v588 = vld [vmem:[#allocation8 + $0xc] sm:$0xf]
    %v589 = vld [vmem:[#allocation8 + $0x10] sm:$0xf]
    %v590 = vld [vmem:[#allocation8 + $0x14] sm:$0xf]
    %v591 = vld [vmem:[#allocation8 + $0x18] sm:$0xf]
    %v592 = vld [vmem:[#allocation8 + $0x1c] sm:$0xf]
    %v593 = vld [vmem:[#allocation8 + $0x20] sm:$0xf]
    %v594 = vld [vmem:[#allocation8 + $0x24] sm:$0xf]
    %v595 = vld [vmem:[#allocation8 + $0x28] sm:$0xf]
    %v596 = vld [vmem:[#allocation8 + $0x2c] sm:$0xf]
    %v597 = vld [vmem:[#allocation8 + $0x30] sm:$0xf]
    %v598 = vld [vmem:[#allocation8 + $0x34] sm:$0xf]
    %v599 = vld [vmem:[#allocation8 + $0x38] sm:$0xf]
    %v600 = vld [vmem:[#allocation8 + $0x3c] sm:$0xf]
    %v601 = vld [vmem:[#allocation10] sm:$0x1]
    %v603 = vperm.slane %v601, 0
    %v621 = vunpack.c.l.b16 %v585
    %v622 = vunpack.c.l.b16 %v586
    %v623 = vunpack.c.l.b16 %v587
    %v624 = vunpack.c.l.b16 %v588
    %v625 = vunpack.c.l.b16 %v589
    %v626 = vunpack.c.l.b16 %v590
    %v627 = vunpack.c.l.b16 %v591
    %v628 = vunpack.c.l.b16 %v592
    %v629 = vunpack.c.l.b16 %v593
    %v630 = vunpack.c.l.b16 %v594
    %v631 = vunpack.c.l.b16 %v595
    %v632 = vunpack.c.l.b16 %v596
    %v633 = vunpack.c.l.b16 %v597
    %v634 = vunpack.c.l.b16 %v598
    %v635 = vunpack.c.l.b16 %v599
    %v636 = vunpack.c.l.b16 %v600
    %v637 = vpack.c.b16 %v622, %v621
    %v638 = vpack.c.b16 %v624, %v623
    %v639 = vpack.c.b16 %v626, %v625
    %v640 = vpack.c.b16 %v628, %v627
    %v641 = vpack.c.b16 %v630, %v629
    %v642 = vpack.c.b16 %v632, %v631
    %v643 = vpack.c.b16 %v634, %v633
    %v644 = vpack.c.b16 %v636, %v635
    %653 = vmatpush.bf16.msra.mxu0 %v644
    %654 = vmatpush.bf16.msra.mxu0 %v643
    %655 = vmatpush.bf16.msra.mxu0 %v642
    %656 = vmatpush.bf16.msra.mxu0 %v641
    %657 = vmatpush.bf16.msra.mxu0 %v640
    %658 = vmatpush.bf16.msra.mxu0 %v639
    %659 = vmatpush.bf16.msra.mxu0 %v638
    %660 = vmatpush.bf16.msra.mxu0 %v637
    %661 = vmatmul.bf16.gmra.mxu0 %v584
    %v662 = vpop.f32.mrf.mxu0
    %v663 = vadd.f32 %v603, %v662
    %v664 = vpop.f32.mrf.mxu0
    %665 = vdwg.mxu0
    %666 = vadd.xlane.f32.xlu0 %v663
    %v667 = vpop.xlane.xlu0 %666
    %v668 = vmul.f32 %v667, %v249
    %v669 = vmul.f32 %v663, %v663
    %670 = vadd.xlane.f32.xlu0 %v669
    %v671 = vpop.xlane.xlu0 %670
    %v672 = vmul.f32 %v671, %v249
    %v673 = vmul.f32 %v668, %v668
    %v674 = vsub.f32 %v672, %v673
    %v675 = vsub.f32 %v663, %v668
    %v676 = vadd.f32 %v674, 1e-05
    %v677 = vrsqrt.pop %v676
    %v678 = vmul.f32 %v677, %v676
    %v679 = vmul.f32 %v678, %v677
    %v680 = vmul.f32 0.5, %v679
    %v681 = vsub.f32 1.5, %v680
    %v682 = vmul.f32 %v677, %v681
    %vm683 = vweird.f32 %v676
    %vm684 = vweird.f32 %v677
    %vm685 = vmor %vm683, %vm684
    %v686 = vsel %vm685, %v677, %v682
    %v687 = vmul.f32 %v675, %v686
    %v688 = vpack.c.bf16 %v687, %v687
    %s689 = scalar_lea.vmem [#allocation11], 128
    %v690 = vld [vmem:[%s689] sm:$0xff]
    %v691 = vld [vmem:[%s689 + $0x8] sm:$0xff]
    %v692 = vld [vmem:[%s689 + $0x10] sm:$0xff]
    %v693 = vld [vmem:[%s689 + $0x18] sm:$0xff]
    %v694 = vld [vmem:[%s689 + $0x20] sm:$0xff]
    %v695 = vld [vmem:[%s689 + $0x28] sm:$0xff]
    %v696 = vld [vmem:[%s689 + $0x30] sm:$0xff]
    %v697 = vld [vmem:[%s689 + $0x38] sm:$0xff]
    %v698 = vld [vmem:[%s689 + $0x40] sm:$0xff]
    %v699 = vld [vmem:[%s689 + $0x48] sm:$0xff]
    %v700 = vld [vmem:[%s689 + $0x50] sm:$0xff]
    %v701 = vld [vmem:[%s689 + $0x58] sm:$0xff]
    %v702 = vld [vmem:[%s689 + $0x60] sm:$0xff]
    %v703 = vld [vmem:[%s689 + $0x68] sm:$0xff]
    %v704 = vld [vmem:[%s689 + $0x70] sm:$0xff]
    %v705 = vld [vmem:[%s689 + $0x78] sm:$0xff]
    %s706 = scalar_lea.vmem %s6, 2
    %v707 = vld [vmem:[%s706] sm:$0x3]
    %v709 = vperm.slane %v707, 0
    %v710 = vperm.slane %v707, 1
    %v729 = vunpack.c.l.b16 %v690
    %v730 = vunpack.c.h.b16 %v690
    %v731 = vunpack.c.l.b16 %v691
    %v732 = vunpack.c.h.b16 %v691
    %v733 = vunpack.c.l.b16 %v692
    %v734 = vunpack.c.h.b16 %v692
    %v735 = vunpack.c.l.b16 %v693
    %v736 = vunpack.c.h.b16 %v693
    %v737 = vunpack.c.l.b16 %v694
    %v738 = vunpack.c.h.b16 %v694
    %v739 = vunpack.c.l.b16 %v695
    %v740 = vunpack.c.h.b16 %v695
    %v741 = vunpack.c.l.b16 %v696
    %v742 = vunpack.c.h.b16 %v696
    %v743 = vunpack.c.l.b16 %v697
    %v744 = vunpack.c.h.b16 %v697
    %v745 = vunpack.c.l.b16 %v698
    %v746 = vunpack.c.h.b16 %v698
    %v747 = vunpack.c.l.b16 %v699
    %v748 = vunpack.c.h.b16 %v699
    %v749 = vunpack.c.l.b16 %v700
    %v750 = vunpack.c.h.b16 %v700
    %v751 = vunpack.c.l.b16 %v701
    %v752 = vunpack.c.h.b16 %v701
    %v753 = vunpack.c.l.b16 %v702
    %v754 = vunpack.c.h.b16 %v702
    %v755 = vunpack.c.l.b16 %v703
    %v756 = vunpack.c.h.b16 %v703
    %v757 = vunpack.c.l.b16 %v704
    %v758 = vunpack.c.h.b16 %v704
    %v759 = vunpack.c.l.b16 %v705
    %v760 = vunpack.c.h.b16 %v705
    %v761 = vpack.c.b16 %v731, %v729
    %v762 = vpack.c.b16 %v732, %v730
    %v763 = vpack.c.b16 %v735, %v733
    %v764 = vpack.c.b16 %v736, %v734
    %v765 = vpack.c.b16 %v739, %v737
    %v766 = vpack.c.b16 %v740, %v738
    %v767 = vpack.c.b16 %v743, %v741
    %v768 = vpack.c.b16 %v744, %v742
    %v769 = vpack.c.b16 %v747, %v745
    %v770 = vpack.c.b16 %v748, %v746
    %v771 = vpack.c.b16 %v751, %v749
    %v772 = vpack.c.b16 %v752, %v750
    %v773 = vpack.c.b16 %v755, %v753
    %v774 = vpack.c.b16 %v756, %v754
    %v775 = vpack.c.b16 %v759, %v757
    %v776 = vpack.c.b16 %v760, %v758
    %793 = vmatpush.bf16.msra.mxu0 %v775
    %794 = vmatpush.bf16.msra.mxu0 %v773
    %795 = vmatpush.bf16.msra.mxu0 %v771
    %796 = vmatpush.bf16.msra.mxu0 %v769
    %797 = vmatpush.bf16.msra.mxu0 %v767
    %798 = vmatpush.bf16.msra.mxu0 %v765
    %799 = vmatpush.bf16.msra.mxu0 %v763
    %800 = vmatpush.bf16.msra.mxu0 %v761
    %801 = vmatmul.bf16.gmra.mxu0 %v688
    %v802 = vpop.f32.mrf.mxu0
    %v803 = vadd.f32 %v709, %v802
    %v804 = vpop.f32.mrf.mxu0
    %805 = vdwg.mxu0
    %806 = vmatpush.bf16.msra.mxu0 %v776
    %807 = vmatpush.bf16.msra.mxu0 %v774
    %808 = vmatpush.bf16.msra.mxu0 %v772
    %809 = vmatpush.bf16.msra.mxu0 %v770
    %810 = vmatpush.bf16.msra.mxu0 %v768
    %811 = vmatpush.bf16.msra.mxu0 %v766
    %812 = vmatpush.bf16.msra.mxu0 %v764
    %813 = vmatpush.bf16.msra.mxu0 %v762
    %814 = vmatmul.bf16.gmra.mxu0 %v688
    %v815 = vpop.f32.mrf.mxu0
    %v816 = vadd.f32 %v710, %v815
    %v817 = vpop.f32.mrf.mxu0
    %818 = vdwg.mxu0
    %v819 = vmax.f32 %v803, 0.0
    %v820 = vmax.f32 %v816, 0.0
    %v821 = vpack.c.bf16 %v819, %v819
    %v822 = vpack.c.bf16 %v820, %v820
    %s823 = scalar_lea.vmem [#allocation13], 128
    %v824 = vld [vmem:[%s823] sm:$0xf]
    %v825 = vld [vmem:[%s823 + $0x4] sm:$0xf]
    %v826 = vld [vmem:[%s823 + $0x8] sm:$0xf]
    %v827 = vld [vmem:[%s823 + $0xc] sm:$0xf]
    %v828 = vld [vmem:[%s823 + $0x10] sm:$0xf]
    %v829 = vld [vmem:[%s823 + $0x14] sm:$0xf]
    %v830 = vld [vmem:[%s823 + $0x18] sm:$0xf]
    %v831 = vld [vmem:[%s823 + $0x1c] sm:$0xf]
    %v832 = vld [vmem:[%s823 + $0x20] sm:$0xf]
    %v833 = vld [vmem:[%s823 + $0x24] sm:$0xf]
    %v834 = vld [vmem:[%s823 + $0x28] sm:$0xf]
    %v835 = vld [vmem:[%s823 + $0x2c] sm:$0xf]
    %v836 = vld [vmem:[%s823 + $0x30] sm:$0xf]
    %v837 = vld [vmem:[%s823 + $0x34] sm:$0xf]
    %v838 = vld [vmem:[%s823 + $0x38] sm:$0xf]
    %v839 = vld [vmem:[%s823 + $0x3c] sm:$0xf]
    %v840 = vld [vmem:[%s823 + $0x40] sm:$0xf]
    %v841 = vld [vmem:[%s823 + $0x44] sm:$0xf]
    %v842 = vld [vmem:[%s823 + $0x48] sm:$0xf]
    %v843 = vld [vmem:[%s823 + $0x4c] sm:$0xf]
    %v844 = vld [vmem:[%s823 + $0x50] sm:$0xf]
    %v845 = vld [vmem:[%s823 + $0x54] sm:$0xf]
    %v846 = vld [vmem:[%s823 + $0x58] sm:$0xf]
    %v847 = vld [vmem:[%s823 + $0x5c] sm:$0xf]
    %v848 = vld [vmem:[%s823 + $0x60] sm:$0xf]
    %v849 = vld [vmem:[%s823 + $0x64] sm:$0xf]
    %v850 = vld [vmem:[%s823 + $0x68] sm:$0xf]
    %v851 = vld [vmem:[%s823 + $0x6c] sm:$0xf]
    %v852 = vld [vmem:[%s823 + $0x70] sm:$0xf]
    %v853 = vld [vmem:[%s823 + $0x74] sm:$0xf]
    %v854 = vld [vmem:[%s823 + $0x78] sm:$0xf]
    %v855 = vld [vmem:[%s823 + $0x7c] sm:$0xf]
    %s856 = scalar_lea.vmem %s8, 1
    %v857 = vld [vmem:[%s856] sm:$0x1]
    %v859 = vperm.slane %v857, 0
    %v893 = vunpack.c.l.b16 %v824
    %v894 = vunpack.c.l.b16 %v825
    %v895 = vunpack.c.l.b16 %v826
    %v896 = vunpack.c.l.b16 %v827
    %v897 = vunpack.c.l.b16 %v828
    %v898 = vunpack.c.l.b16 %v829
    %v899 = vunpack.c.l.b16 %v830
    %v900 = vunpack.c.l.b16 %v831
    %v901 = vunpack.c.l.b16 %v832
    %v902 = vunpack.c.l.b16 %v833
    %v903 = vunpack.c.l.b16 %v834
    %v904 = vunpack.c.l.b16 %v835
    %v905 = vunpack.c.l.b16 %v836
    %v906 = vunpack.c.l.b16 %v837
    %v907 = vunpack.c.l.b16 %v838
    %v908 = vunpack.c.l.b16 %v839
    %v909 = vunpack.c.l.b16 %v840
    %v910 = vunpack.c.l.b16 %v841
    %v911 = vunpack.c.l.b16 %v842
    %v912 = vunpack.c.l.b16 %v843
    %v913 = vunpack.c.l.b16 %v844
    %v914 = vunpack.c.l.b16 %v845
    %v915 = vunpack.c.l.b16 %v846
    %v916 = vunpack.c.l.b16 %v847
    %v917 = vunpack.c.l.b16 %v848
    %v918 = vunpack.c.l.b16 %v849
    %v919 = vunpack.c.l.b16 %v850
    %v920 = vunpack.c.l.b16 %v851
    %v921 = vunpack.c.l.b16 %v852
    %v922 = vunpack.c.l.b16 %v853
    %v923 = vunpack.c.l.b16 %v854
    %v924 = vunpack.c.l.b16 %v855
    %v925 = vpack.c.b16 %v894, %v893
    %v926 = vpack.c.b16 %v896, %v895
    %v927 = vpack.c.b16 %v898, %v897
    %v928 = vpack.c.b16 %v900, %v899
    %v929 = vpack.c.b16 %v902, %v901
    %v930 = vpack.c.b16 %v904, %v903
    %v931 = vpack.c.b16 %v906, %v905
    %v932 = vpack.c.b16 %v908, %v907
    %v933 = vpack.c.b16 %v910, %v909
    %v934 = vpack.c.b16 %v912, %v911
    %v935 = vpack.c.b16 %v914, %v913
    %v936 = vpack.c.b16 %v916, %v915
    %v937 = vpack.c.b16 %v918, %v917
    %v938 = vpack.c.b16 %v920, %v919
    %v939 = vpack.c.b16 %v922, %v921
    %v940 = vpack.c.b16 %v924, %v923
    %957 = vmatpush.bf16.msra.mxu0 %v932
    %958 = vmatpush.bf16.msra.mxu0 %v931
    %959 = vmatpush.bf16.msra.mxu0 %v930
    %960 = vmatpush.bf16.msra.mxu0 %v929
    %961 = vmatpush.bf16.msra.mxu0 %v928
    %962 = vmatpush.bf16.msra.mxu0 %v927
    %963 = vmatpush.bf16.msra.mxu0 %v926
    %964 = vmatpush.bf16.msra.mxu0 %v925
    %965 = vmatmul.bf16.gmra.mxu0 %v821
    %v966 = vpop.f32.mrf.mxu0
    %v967 = vadd.f32 %v859, %v966
    %v968 = vpop.f32.mrf.mxu0
    %969 = vdwg.mxu0
    %970 = vmatpush.bf16.msra.mxu0 %v940
    %971 = vmatpush.bf16.msra.mxu0 %v939
    %972 = vmatpush.bf16.msra.mxu0 %v938
    %973 = vmatpush.bf16.msra.mxu0 %v937
    %974 = vmatpush.bf16.msra.mxu0 %v936
    %975 = vmatpush.bf16.msra.mxu0 %v935
    %976 = vmatpush.bf16.msra.mxu0 %v934
    %977 = vmatpush.bf16.msra.mxu0 %v933
    %978 = vmatmul.bf16.gmra.mxu0 %v822
    %v979 = vpop.f32.mrf.mxu0
    %v980 = vadd.f32 %v967, %v979
    %v981 = vpop.f32.mrf.mxu0
    %982 = vdwg.mxu0
    %v983 = vadd.f32 %v687, %v980
    %984 = vadd.xlane.f32.xlu0 %v983
    %v985 = vpop.xlane.xlu0 %984
    %v986 = vmul.f32 %v985, %v249
    %v987 = vmul.f32 %v983, %v983
    %988 = vadd.xlane.f32.xlu0 %v987
    %v989 = vpop.xlane.xlu0 %988
    %v990 = vmul.f32 %v989, %v249
    %v991 = vmul.f32 %v986, %v986
    %v992 = vsub.f32 %v990, %v991
    %v993 = vsub.f32 %v983, %v986
    %v994 = vadd.f32 %v992, 1e-05
    %v995 = vrsqrt.pop %v994
    %v996 = vmul.f32 %v995, %v994
    %v997 = vmul.f32 %v996, %v995
    %v998 = vmul.f32 0.5, %v997
    %v999 = vsub.f32 1.5, %v998
    %v1000 = vmul.f32 %v995, %v999
    %vm1001 = vweird.f32 %v994
    %vm1002 = vweird.f32 %v995
    %vm1003 = vmor %vm1001, %vm1002
    %v1004 = vsel %vm1003, %v995, %v1000
    %v1005 = vmul.f32 %v993, %v1004
    %v1006 = vpack.c.bf16 %v1005, %v1005
    %v1007 = vld [vmem:[#allocation14] sm:$0xf]
    %v1008 = vld [vmem:[#allocation14 + $0x4] sm:$0xf]
    %v1009 = vld [vmem:[#allocation14 + $0x8] sm:$0xf]
    %v1010 = vld [vmem:[#allocation14 + $0xc] sm:$0xf]
    %v1011 = vld [vmem:[#allocation14 + $0x10] sm:$0xf]
    %v1012 = vld [vmem:[#allocation14 + $0x14] sm:$0xf]
    %v1013 = vld [vmem:[#allocation14 + $0x18] sm:$0xf]
    %v1014 = vld [vmem:[#allocation14 + $0x1c] sm:$0xf]
    %v1015 = vld [vmem:[#allocation14 + $0x20] sm:$0xf]
    %v1016 = vld [vmem:[#allocation14 + $0x24] sm:$0xf]
    %v1017 = vld [vmem:[#allocation14 + $0x28] sm:$0xf]
    %v1018 = vld [vmem:[#allocation14 + $0x2c] sm:$0xf]
    %v1019 = vld [vmem:[#allocation14 + $0x30] sm:$0xf]
    %v1020 = vld [vmem:[#allocation14 + $0x34] sm:$0xf]
    %v1021 = vld [vmem:[#allocation14 + $0x38] sm:$0xf]
    %v1022 = vld [vmem:[#allocation14 + $0x3c] sm:$0xf]
    %v1023 = vld [vmem:[%s10] sm:$0x1]
    %v1025 = vperm.slane %v1023, 0
    %v1043 = vunpack.c.l.b16 %v1007
    %v1044 = vunpack.c.l.b16 %v1008
    %v1045 = vunpack.c.l.b16 %v1009
    %v1046 = vunpack.c.l.b16 %v1010
    %v1047 = vunpack.c.l.b16 %v1011
    %v1048 = vunpack.c.l.b16 %v1012
    %v1049 = vunpack.c.l.b16 %v1013
    %v1050 = vunpack.c.l.b16 %v1014
    %v1051 = vunpack.c.l.b16 %v1015
    %v1052 = vunpack.c.l.b16 %v1016
    %v1053 = vunpack.c.l.b16 %v1017
    %v1054 = vunpack.c.l.b16 %v1018
    %v1055 = vunpack.c.l.b16 %v1019
    %v1056 = vunpack.c.l.b16 %v1020
    %v1057 = vunpack.c.l.b16 %v1021
    %v1058 = vunpack.c.l.b16 %v1022
    %v1059 = vpack.c.b16 %v1044, %v1043
    %v1060 = vpack.c.b16 %v1046, %v1045
    %v1061 = vpack.c.b16 %v1048, %v1047
    %v1062 = vpack.c.b16 %v1050, %v1049
    %v1063 = vpack.c.b16 %v1052, %v1051
    %v1064 = vpack.c.b16 %v1054, %v1053
    %v1065 = vpack.c.b16 %v1056, %v1055
    %v1066 = vpack.c.b16 %v1058, %v1057
    %1075 = vmatpush.bf16.msra.mxu0 %v1066
    %1076 = vmatpush.bf16.msra.mxu0 %v1065
    %1077 = vmatpush.bf16.msra.mxu0 %v1064
    %1078 = vmatpush.bf16.msra.mxu0 %v1063
    %1079 = vmatpush.bf16.msra.mxu0 %v1062
    %1080 = vmatpush.bf16.msra.mxu0 %v1061
    %1081 = vmatpush.bf16.msra.mxu0 %v1060
    %1082 = vmatpush.bf16.msra.mxu0 %v1059
    %1083 = vmatmul.bf16.gmra.mxu0 %v1006
    %v1084 = vpop.f32.mrf.mxu0
    %v1085 = vadd.f32 %v1025, %v1084
    %v1086 = vpop.f32.mrf.mxu0
    %1087 = vdwg.mxu0
    %1088 = vst [vmem:[#allocation16] sm:$0xff] %v1085
    // Predicated region
    $region78: #{tpu_custom_call.1} parent=1 // pred_check
      _
    $region79: #{tpu_custom_call.1} parent=1 // pred_check_branch
      %1090 = sbr.rel (0) target = $region81
    $region80: #{tpu_custom_call.1} parent=1 // pred_region
      %1092 = vsyncadd [#allocation4], 0
      %s1094 = sshll.u32 [#allocation16], 4
      %s1095 = int_to_ptr.vmem [resolvable:$true] %s1094
      %s1096 = sshll.u32 %s11, 4
      %s1097 = int_to_ptr.hbm [resolvable:$true] %s1096
      %1099 = dma.vmem_to_hbm [thread:$0]  %s1095, 128, %s1097, [#allocation4]
    $region81: #{tpu_custom_call.1} parent=1 // pred_fallthru
      _
    // Predicated region
    $region82: #{tpu_custom_call.1} parent=1 // pred_check
      _
    $region83: #{tpu_custom_call.1} parent=1 // pred_check_branch
      %1101 = sbr.rel (0) target = $region85
    $region84: #{tpu_custom_call.1} parent=1 // pred_region
      %1103 = dma.done [#allocation4], 128
    $region85: #{tpu_custom_call.1} parent=1 // pred_fallthru
      _
    %1104 = vsyncpa [#allocation3], 1
    %1105 = vsyncpa [#allocation6], 1
    %1106 = vsyncpa [#allocation9], 1
    %1107 = vsyncpa [#allocation12], 1
    %1108 = vsyncpa [#allocation15], 1
    %1109 = vsyncpa [#allocation4], 1

</llo_original>
